<compile_context>
chip_gen: v7x
topology: tpu7x:2x2x1
jax: 0.10.0
libtpu: 0.0.40
codegen_flags: <defaults>
</compile_context>

<pallas_src>
import functools

import jax
import jax.numpy as jnp
from jax.experimental import pallas as pl
from jax.experimental.pallas import tpu as pltpu


def simple_attention_kernel(h_d_ref, h_e_ref, mask_ref,
                            wdT_ref, bde_ref, weT_ref, wv_ref,
                            out_ref):
    TB, H = h_d_ref.shape
    S = mask_ref.shape[1]
    F = h_e_ref.shape[2]          # = 2H, unpadded

    h_d = h_d_ref[...]            # (TB, H)     bf16 (or f32)
    h_e3 = h_e_ref[...]           # (TB, S, F)  bf16 (or f32)
    mask = mask_ref[...]          # (TB, S)     int32

    # W_d(h_d) with the W_d+W_e biases folded into one host-side vector; f32 acc.
    wd_hd = jnp.dot(h_d, wdT_ref[...],
                    preferred_element_type=jnp.float32) + bde_ref[...]        # (TB, H)

    # W_e(h_e): one big MXU matmul over all TB*S rows. The reshape is
    # layout-free because S is padded to a multiple of 8 on the host.
    we_he = jnp.dot(h_e3.reshape(TB * S, F), weT_ref[...],
                    preferred_element_type=jnp.float32).reshape(TB, S, H)     # (TB, S, H)

    t = jnp.tanh(wd_hd[:, None, :] + we_he)                                   # (TB, S, H) f32

    # Score projection v(t): VPU multiply + lane reduce (no tiny matmul).
    # The v-bias is dropped: the masked softmax is shift-invariant w.r.t. it.
    wv = wv_ref[...].reshape(1, 1, H)
    e = jnp.sum(t * wv, axis=-1)                                              # (TB, S)
    e = jnp.where(mask == 0, jnp.float32(-10000000000.0), e)

    # Softmax over the sequence axis (lanes), f32.
    m = jnp.max(e, axis=-1, keepdims=True)
    p = jnp.exp(e - m)
    a = p / jnp.sum(p, axis=-1, keepdims=True)                                # (TB, S)

    # Context: weighted sum over S with f32 accumulation.
    out_ref[...] = jnp.sum(a[:, :, None] * h_e3.astype(jnp.float32), axis=1)  # (TB, F)


def _round_up(x, m):
    return ((x + m - 1) // m) * m


def prepare_params(params, compute_dtype=jnp.bfloat16):
    """One-time weight prep (hoisted out of the per-call path).

    Pre-transposes W_d / W_e, folds their biases into a single f32 vector,
    casts the HBM-resident weight matrices to the ingest dtype, and drops the
    (mathematically inert) v-bias.
    """
    wd, bd, we, be, wv, bv = params
    del bv  # shift-invariant under the masked softmax
    H = wd.shape[0]
    wdT = jnp.asarray(wd.T, dtype=compute_dtype)              # (H, H)
    weT = jnp.asarray(we.T, dtype=compute_dtype)              # (2H, H)
    bias_de = (bd + be).reshape(1, H).astype(jnp.float32)     # (1, H)
    wv1 = wv.reshape(1, H).astype(jnp.float32)                # (1, H)
    return wdT, bias_de, weT, wv1


@functools.partial(jax.jit, static_argnames=("tb",))
def simple_attention(h_d, h_e, mask, prepared, tb=512):
    wdT, bias_de, weT, wv1 = prepared
    B, S, F = h_e.shape           # F = 2H; intentionally NOT padded (dominant HBM stream)
    H = h_d.shape[-1]
    in_dtype = wdT.dtype

    h_d = h_d.astype(in_dtype)
    h_e = h_e.astype(in_dtype)
    mask = mask.astype(jnp.int32)

    # Pad S to a multiple of 8 so the in-kernel reshapes are layout-free.
    # Pad positions are masked (mask=0) with zero h_e, so they contribute nothing.
    Sp = _round_up(S, 8)
    if Sp != S:
        h_e = jnp.pad(h_e, ((0, 0), (0, Sp - S), (0, 0)))
        mask = jnp.pad(mask, ((0, 0), (0, Sp - S)))

    # Batch tiling: large tiles to approach the HBM roofline, but keep >= 2
    # grid steps when possible so both v7x TensorCores get work.
    B8 = _round_up(B, 8)
    TB = min(tb, B8)
    if B8 > 8:
        TB = min(TB, _round_up(B8 // 2, 8))
    Bp = _round_up(B, TB)
    if Bp != B:
        h_d = jnp.pad(h_d, ((0, Bp - B), (0, 0)))
        h_e = jnp.pad(h_e, ((0, Bp - B), (0, 0), (0, 0)))
        # Pad rows get mask=1 so their (discarded) softmax stays finite.
        mask = jnp.pad(mask, ((0, Bp - B), (0, 0)), constant_values=1)

    out = pl.pallas_call(
        simple_attention_kernel,
        out_shape=jax.ShapeDtypeStruct((Bp, F), jnp.float32),
        grid_spec=pltpu.PrefetchScalarGridSpec(
            num_scalar_prefetch=0,
            grid=(Bp // TB,),
            in_specs=[
                pl.BlockSpec((TB, H), lambda b: (b, 0)),         # h_d
                pl.BlockSpec((TB, Sp, F), lambda b: (b, 0, 0)),  # h_e (unpadded features)
                pl.BlockSpec((TB, Sp), lambda b: (b, 0)),        # mask
                pl.BlockSpec((H, H), lambda b: (0, 0)),          # W_d.weight.T
                pl.BlockSpec((1, H), lambda b: (0, 0)),          # folded bias bd+be
                pl.BlockSpec((F, H), lambda b: (0, 0)),          # W_e.weight.T
                pl.BlockSpec((1, H), lambda b: (0, 0)),          # v.weight
            ],
            out_specs=pl.BlockSpec((TB, F), lambda b: (b, 0)),
        ),
        compiler_params=pltpu.CompilerParams(
            dimension_semantics=("parallel",)),
    )(h_d, h_e, mask, wdT, bias_de, weT, wv1)

    return out[:B]


def reference(h_d, h_e, mask, params):
    wd, bd, we, be, wv, bv = params
    wd_hd = h_d @ wd.T + bd                          # (B, H)
    we_he = h_e @ we.T + be                          # (B, S, H)
    t = jnp.tanh(wd_hd[:, None, :] + we_he)          # (B, S, H)
    e_t = jnp.einsum("bsh,h->bs", t, wv[0]) + bv[0, 0]
    e_t = jnp.where(mask == 0, -10000000000.0, e_t)
    a_t = jax.nn.softmax(e_t, axis=-1)
    return jnp.einsum("bs,bsk->bk", a_t, h_e)


if __name__ == "__main__":
    B, S, H = 2, 8, 32
    key = jax.random.PRNGKey(0)
    ks = jax.random.split(key, 9)

    h_d = jax.random.normal(ks[0], (B, H), jnp.float32)
    h_e = jax.random.normal(ks[1], (B, S, 2 * H), jnp.float32)
    mask = (jax.random.uniform(ks[2], (B, S)) > 0.3).astype(jnp.int32)
    mask = mask.at[:, 0].set(1)  # at least one unmasked position per row (avoids 0/0)

    # Deterministic parameter init (shapes from nn.Linear in __init__),
    # PyTorch-style uniform(-1/sqrt(fan_in), 1/sqrt(fan_in)).
    sd = 1.0 / (H ** 0.5)
    se = 1.0 / ((2 * H) ** 0.5)
    wd = jax.random.uniform(ks[3], (H, H), jnp.float32, -sd, sd)        # W_d.weight
    bd = jax.random.uniform(ks[4], (1, H), jnp.float32, -sd, sd)        # W_d.bias
    we = jax.random.uniform(ks[5], (H, 2 * H), jnp.float32, -se, se)    # W_e.weight
    be = jax.random.uniform(ks[6], (1, H), jnp.float32, -se, se)        # W_e.bias
    wv = jax.random.uniform(ks[7], (1, H), jnp.float32, -sd, sd)        # v.weight
    bv = jax.random.uniform(ks[8], (1, 1), jnp.float32, -sd, sd)        # v.bias
    params = (wd, bd, we, be, wv, bv)

    ref = reference(h_d, h_e, mask, params)

    # f32 path: exact-semantics check against the reference.
    prep_f32 = prepare_params(params, compute_dtype=jnp.float32)
    out_f32 = simple_attention(h_d, h_e, mask, prep_f32)
    jax.block_until_ready(out_f32)
    assert out_f32.shape == (B, 2 * H)
    assert jnp.allclose(out_f32, ref, atol=1e-5, rtol=1e-5), "f32 mismatch vs JAX reference"

    # bf16-ingest path (the performance configuration): looser tolerance.
    prep_bf16 = prepare_params(params, compute_dtype=jnp.bfloat16)
    out_bf16 = simple_attention(h_d, h_e, mask, prep_bf16)
    jax.block_until_ready(out_bf16)
    assert out_bf16.shape == (B, 2 * H)
    assert jnp.allclose(out_bf16, ref, atol=3e-2, rtol=3e-2), "bf16 mismatch vs JAX reference"

    print("KERNEL_OK")
</pallas_src>

<mosaic_0001>
module attributes {stable_mosaic.version = 11 : i64} {
  func.func @simple_attention_kernel(%arg0: i32, %arg1: memref<8x32xf32, #tpu.memory_space<vmem>>, %arg2: memref<8x8x64xf32, #tpu.memory_space<vmem>>, %arg3: memref<8x8xi32, #tpu.memory_space<vmem>>, %arg4: memref<32x32xf32, #tpu.memory_space<vmem>>, %arg5: memref<1x32xf32, #tpu.memory_space<vmem>>, %arg6: memref<64x32xf32, #tpu.memory_space<vmem>>, %arg7: memref<1x32xf32, #tpu.memory_space<vmem>>, %arg8: memref<8x64xf32, #tpu.memory_space<vmem>>) attributes {dimension_semantics = [#tpu.dimension_semantics<parallel>], iteration_bounds = array<i64: 1>, scalar_prefetch = 0 : i64, scratch_operands = 0 : i64, tpu.core_type = #tpu.core_type<tc>, window_params = [{transform_indices = @transform_0, window_bounds = array<i64: 8, 32>}, {transform_indices = @transform_1, window_bounds = array<i64: 8, 8, 64>}, {transform_indices = @transform_2, window_bounds = array<i64: 8, 8>}, {pipeline_mode = #tpu.pipeline_mode<synchronous>, transform_indices = @transform_3, window_bounds = array<i64: 32, 32>}, {pipeline_mode = #tpu.pipeline_mode<synchronous>, transform_indices = @transform_4, window_bounds = array<i64: 1, 32>}, {pipeline_mode = #tpu.pipeline_mode<synchronous>, transform_indices = @transform_5, window_bounds = array<i64: 64, 32>}, {pipeline_mode = #tpu.pipeline_mode<synchronous>, transform_indices = @transform_6, window_bounds = array<i64: 1, 32>}, {transform_indices = @transform_7, window_bounds = array<i64: 8, 64>}]} {
    %c0 = arith.constant 0 : index
    %c0_0 = arith.constant 0 : index
    %0 = vector.load %arg1[%c0, %c0_0] : memref<8x32xf32, #tpu.memory_space<vmem>>, vector<8x32xf32>
    %c0_1 = arith.constant 0 : index
    %c0_2 = arith.constant 0 : index
    %c0_3 = arith.constant 0 : index
    %1 = vector.load %arg2[%c0_1, %c0_2, %c0_3] : memref<8x8x64xf32, #tpu.memory_space<vmem>>, vector<8x8x64xf32>
    %c0_4 = arith.constant 0 : index
    %c0_5 = arith.constant 0 : index
    %2 = vector.load %arg3[%c0_4, %c0_5] : memref<8x8xi32, #tpu.memory_space<vmem>>, vector<8x8xi32>
    %c0_6 = arith.constant 0 : index
    %c0_7 = arith.constant 0 : index
    %3 = vector.load %arg4[%c0_6, %c0_7] : memref<32x32xf32, #tpu.memory_space<vmem>>, vector<32x32xf32>
    %cst = arith.constant dense<0.000000e+00> : vector<8x32xf32>
    %4 = tpu.matmul %0, %3, %cst {dimension_numbers = #tpu.dot_dimension_numbers<[1], [0], [0], [1], [0, 0, 1, 1], [], []>} : vector<8x32xf32>, vector<32x32xf32>, vector<8x32xf32> -> vector<8x32xf32>
    %c0_8 = arith.constant 0 : index
    %c0_9 = arith.constant 0 : index
    %5 = vector.load %arg5[%c0_8, %c0_9] : memref<1x32xf32, #tpu.memory_space<vmem>>, vector<1x32xf32>
    %6 = vector.broadcast %5 : vector<1x32xf32> to vector<8x32xf32>
    %7 = arith.addf %4, %6 : vector<8x32xf32>
    %8 = vector.shape_cast %1 : vector<8x8x64xf32> to vector<64x64xf32>
    %c0_10 = arith.constant 0 : index
    %c0_11 = arith.constant 0 : index
    %9 = vector.load %arg6[%c0_10, %c0_11] : memref<64x32xf32, #tpu.memory_space<vmem>>, vector<64x32xf32>
    %cst_12 = arith.constant dense<0.000000e+00> : vector<64x32xf32>
    %10 = tpu.matmul %8, %9, %cst_12 {dimension_numbers = #tpu.dot_dimension_numbers<[1], [0], [0], [1], [0, 0, 1, 1], [], []>} : vector<64x64xf32>, vector<64x32xf32>, vector<64x32xf32> -> vector<64x32xf32>
    %11 = vector.shape_cast %10 : vector<64x32xf32> to vector<8x8x32xf32>
    %12 = vector.shape_cast %7 : vector<8x32xf32> to vector<8x1x32xf32>
    %13 = vector.broadcast %12 : vector<8x1x32xf32> to vector<8x8x32xf32>
    %14 = arith.addf %13, %11 : vector<8x8x32xf32>
    %15 = math.tanh %14 : vector<8x8x32xf32>
    %c0_13 = arith.constant 0 : index
    %c0_14 = arith.constant 0 : index
    %16 = vector.load %arg7[%c0_13, %c0_14] : memref<1x32xf32, #tpu.memory_space<vmem>>, vector<1x32xf32>
    %17 = vector.shape_cast %16 : vector<1x32xf32> to vector<1x1x32xf32>
    %18 = vector.broadcast %17 : vector<1x1x32xf32> to vector<8x8x32xf32>
    %19 = arith.mulf %15, %18 : vector<8x8x32xf32>
    %cst_15 = arith.constant dense<0.000000e+00> : vector<8x8xf32>
    %20 = vector.multi_reduction <add>, %19, %cst_15 [2] : vector<8x8x32xf32> to vector<8x8xf32>
    %c0_i32 = arith.constant 0 : i32
    %21 = vector.broadcast %c0_i32 : i32 to vector<8x8xi32>
    %22 = arith.cmpi eq, %2, %21 : vector<8x8xi32>
    %cst_16 = arith.constant -1.000000e+10 : f32
    %23 = vector.broadcast %cst_16 : f32 to vector<8x8xf32>
    %24 = arith.select %22, %23, %20 : vector<8x8xi1>, vector<8x8xf32>
    %cst_17 = arith.constant dense<0xFF800000> : vector<8xf32>
    %25 = vector.multi_reduction <maximumf>, %24, %cst_17 [1] : vector<8x8xf32> to vector<8xf32>
    %26 = vector.shape_cast %25 : vector<8xf32> to vector<8x1xf32>
    %27 = vector.broadcast %26 : vector<8x1xf32> to vector<8x8xf32>
    %28 = arith.subf %24, %27 : vector<8x8xf32>
    %29 = math.exp %28 : vector<8x8xf32>
    %cst_18 = arith.constant dense<0.000000e+00> : vector<8xf32>
    %30 = vector.multi_reduction <add>, %29, %cst_18 [1] : vector<8x8xf32> to vector<8xf32>
    %31 = vector.shape_cast %30 : vector<8xf32> to vector<8x1xf32>
    %32 = vector.broadcast %31 : vector<8x1xf32> to vector<8x8xf32>
    %33 = arith.divf %29, %32 : vector<8x8xf32>
    %34 = vector.shape_cast %33 : vector<8x8xf32> to vector<8x8x1xf32>
    %35 = vector.broadcast %34 : vector<8x8x1xf32> to vector<8x8x64xf32>
    %36 = arith.mulf %35, %1 : vector<8x8x64xf32>
    %cst_19 = arith.constant dense<0.000000e+00> : vector<8x64xf32>
    %37 = vector.multi_reduction <add>, %36, %cst_19 [1] : vector<8x8x64xf32> to vector<8x64xf32>
    %c0_20 = arith.constant 0 : index
    %c0_21 = arith.constant 0 : index
    %38 = vector.load %arg8[%c0_20, %c0_21] : memref<8x64xf32, #tpu.memory_space<vmem>>, vector<8x64xf32>
    tpu.vector_store %arg8[%c0_20, %c0_21], %37 {strides = array<i32>} : memref<8x64xf32, #tpu.memory_space<vmem>>, vector<8x64xf32>,
    return
  }
  func.func @transform_0(%arg0: i32) -> (i32, i32) {
    %c0_i32 = arith.constant 0 : i32
    %c0_i32_0 = arith.constant 0 : i32
    return %arg0, %c0_i32 : i32, i32
  }
  func.func @transform_1(%arg0: i32) -> (i32, i32, i32) {
    %c0_i32 = arith.constant 0 : i32
    %c0_i32_0 = arith.constant 0 : i32
    %c0_i32_1 = arith.constant 0 : i32
    return %arg0, %c0_i32, %c0_i32_0 : i32, i32, i32
  }
  func.func @transform_2(%arg0: i32) -> (i32, i32) {
    %c0_i32 = arith.constant 0 : i32
    %c0_i32_0 = arith.constant 0 : i32
    return %arg0, %c0_i32 : i32, i32
  }
  func.func @transform_3(%arg0: i32) -> (i32, i32) {
    %c0_i32 = arith.constant 0 : i32
    %c0_i32_0 = arith.constant 0 : i32
    %c0_i32_1 = arith.constant 0 : i32
    return %c0_i32, %c0_i32_0 : i32, i32
  }
  func.func @transform_4(%arg0: i32) -> (i32, i32) {
    %c0_i32 = arith.constant 0 : i32
    %c0_i32_0 = arith.constant 0 : i32
    %c0_i32_1 = arith.constant 0 : i32
    return %c0_i32, %c0_i32_0 : i32, i32
  }
  func.func @transform_5(%arg0: i32) -> (i32, i32) {
    %c0_i32 = arith.constant 0 : i32
    %c0_i32_0 = arith.constant 0 : i32
    %c0_i32_1 = arith.constant 0 : i32
    return %c0_i32, %c0_i32_0 : i32, i32
  }
  func.func @transform_6(%arg0: i32) -> (i32, i32) {
    %c0_i32 = arith.constant 0 : i32
    %c0_i32_0 = arith.constant 0 : i32
    %c0_i32_1 = arith.constant 0 : i32
    return %c0_i32, %c0_i32_0 : i32, i32
  }
  func.func @transform_7(%arg0: i32) -> (i32, i32) {
    %c0_i32 = arith.constant 0 : i32
    %c0_i32_0 = arith.constant 0 : i32
    return %arg0, %c0_i32 : i32, i32
  }
}

</mosaic_0001>

<llo_original>
// kernel: simple_attention.1
$region0: #{simple_attention.1}
  #allocation0 [shape = 'u32[]', space=smem, size = 0x4, offset = 0x4, fixed_abs, tag = 'smem constant byte address 0x4 - core index']
  #allocation1 [shape = 'u32[144,128]{1,0:T(1,128)}', space=vmem, size = 0x12000, scoped, tag = 'internal scratch']
  %s0 = inlined_call_operand.vmem [shape: f32[8,32], index: 0, kind: input, shape index: {}]
  %s1 = inlined_call_operand.vmem [shape: f32[8,8,64], index: 1, kind: input, shape index: {}]
  %s2 = inlined_call_operand.vmem [shape: s32[8,8], index: 2, kind: input, shape index: {}]
  %s3 = inlined_call_operand.vmem [shape: f32[32,32], index: 3, kind: input, shape index: {}]
  %s4 = inlined_call_operand.vmem [shape: f32[1,32], index: 4, kind: input, shape index: {}]
  %s5 = inlined_call_operand.vmem [shape: f32[64,32], index: 5, kind: input, shape index: {}]
  %s6 = inlined_call_operand.vmem [shape: f32[1,32], index: 6, kind: input, shape index: {}]
  %s7 = inlined_call_operand.vmem [shape: f32[8,64], index: 7, kind: output, shape index: {}]
  %s8 = sld [smem:[#allocation0]]
  $region38: #{simple_attention.1} parent=0
    _
  %s10 = ssub.s32 1, %s8
  %s11 = scalar_select 0, %s10, %s8
  // Predicated region
  $region2: #{simple_attention.1} parent=0 // pred_check
    _
  $region3: #{simple_attention.1} parent=0 // pred_check_branch
    %13 = sbr.rel (0) target = $region5
  $region4: #{simple_attention.1} parent=0 // pred_region
    _
  $region5: #{simple_attention.1} parent=0 // pred_fallthru
    _
  // Predicated region
  $region6: #{simple_attention.1} parent=0 // pred_check
    _
  $region7: #{simple_attention.1} parent=0 // pred_check_branch
    %15 = sbr.rel (0) target = $region9
  $region8: #{simple_attention.1} parent=0 // pred_region
    _
  $region9: #{simple_attention.1} parent=0 // pred_fallthru
    _
  // Predicated region
  $region10: #{simple_attention.1} parent=0 // pred_check
    _
  $region11: #{simple_attention.1} parent=0 // pred_check_branch
    %17 = sbr.rel (0) target = $region13
  $region12: #{simple_attention.1} parent=0 // pred_region
    _
  $region13: #{simple_attention.1} parent=0 // pred_fallthru
    _
  // Predicated region
  $region14: #{simple_attention.1} parent=0 // pred_check
    _
  $region15: #{simple_attention.1} parent=0 // pred_check_branch
    %19 = sbr.rel (0) target = $region17
  $region16: #{simple_attention.1} parent=0 // pred_region
    _
  $region17: #{simple_attention.1} parent=0 // pred_fallthru
    _
  // Predicated region
  $region18: #{simple_attention.1} parent=0 // pred_check
    _
  $region19: #{simple_attention.1} parent=0 // pred_check_branch
    %21 = sbr.rel (0) target = $region21
  $region20: #{simple_attention.1} parent=0 // pred_region
    _
  $region21: #{simple_attention.1} parent=0 // pred_fallthru
    _
  // Predicated region
  $region22: #{simple_attention.1} parent=0 // pred_check
    _
  $region23: #{simple_attention.1} parent=0 // pred_check_branch
    %23 = sbr.rel (0) target = $region25
  $region24: #{simple_attention.1} parent=0 // pred_region
    _
  $region25: #{simple_attention.1} parent=0 // pred_fallthru
    _
  // Predicated region
  $region26: #{simple_attention.1} parent=0 // pred_check
    _
  $region27: #{simple_attention.1} parent=0 // pred_check_branch
    %25 = sbr.rel (0) target = $region29
  $region28: #{simple_attention.1} parent=0 // pred_region
    _
  $region29: #{simple_attention.1} parent=0 // pred_fallthru
    _
  %v26 = vld [vmem:[%s0] sm:$0xff]
  %v27 = vld [vmem:[%s1] sm:$0xff]
  %v28 = vld [vmem:[%s1 + $0x8] sm:$0xff]
  %v29 = vld [vmem:[%s1 + $0x10] sm:$0xff]
  %v30 = vld [vmem:[%s1 + $0x18] sm:$0xff]
  %v31 = vld [vmem:[%s1 + $0x20] sm:$0xff]
  %v32 = vld [vmem:[%s1 + $0x28] sm:$0xff]
  %v33 = vld [vmem:[%s1 + $0x30] sm:$0xff]
  %v34 = vld [vmem:[%s1 + $0x38] sm:$0xff]
  %v35 = vld [vmem:[%s2] sm:$0xff]
  %v36 = vld [vmem:[%s3] sm:$0xff]
  %v37 = vld [vmem:[%s3 + $0x8] sm:$0xff]
  %v38 = vld [vmem:[%s3 + $0x10] sm:$0xff]
  %v39 = vld [vmem:[%s3 + $0x18] sm:$0xff]
  %v40 = vld [vmem:[%s4] sm:$0x1]
  %v42 = vlaneseq
  %v43 = vshrl.u32 %v42, 7
  %v44 = vsub.s32 0, %v43
  %v45 = vrot.slane %v40, %v44
  %vm47 = vcmask 261120
  %v49 = vsel %vm47, %v26, 0
  %51 = vmatprep.subr.mxu0 0.0
  %52 = vmatpush1.msra.mxu0 %v36
  %53 = vmatprep.subr.mxu0 0.0
  %54 = vmatpush1.msra.mxu0 %v37
  %55 = vmatprep.subr.mxu0 0.0
  %56 = vmatpush1.msra.mxu0 %v38
  %57 = vmatprep.subr.mxu0 0.0
  %58 = vmatpush1.msra.mxu0 %v39
  %59 = vmatprep.subr.mxu0 0.0
  %60 = vmatpush1.msra.mxu0 0.0
  %61 = vmatprep.subr.mxu0 0.0
  %62 = vmatpush1.msra.mxu0 0.0
  %63 = vmatprep.subr.mxu0 0.0
  %64 = vmatpush1.msra.mxu0 0.0
  %65 = vmatprep.subr.mxu0 0.0
  %66 = vmatpush1.msra.mxu0 0.0
  %67 = vmatprep.subr.mxu0 0.0
  %68 = vmatpush1.msra.mxu0 0.0
  %69 = vmatprep.subr.mxu0 0.0
  %70 = vmatpush1.msra.mxu0 0.0
  %71 = vmatprep.subr.mxu0 0.0
  %72 = vmatpush1.msra.mxu0 0.0
  %73 = vmatprep.subr.mxu0 0.0
  %74 = vmatpush1.msra.mxu0 0.0
  %75 = vmatprep.subr.mxu0 0.0
  %76 = vmatpush1.msra.mxu0 0.0
  %77 = vmatprep.subr.mxu0 0.0
  %78 = vmatpush1.msra.mxu0 0.0
  %79 = vmatprep.subr.mxu0 0.0
  %80 = vmatpush1.msra.mxu0 0.0
  %81 = vmatprep.subr.mxu0 0.0
  %82 = vmatpush1.msra.mxu0 0.0
  %83 = vmatprep.subr.mxu0 0.0
  %84 = vmatpush1.msra.mxu0 0.0
  %85 = vmatprep.subr.mxu0 0.0
  %86 = vmatpush1.msra.mxu0 0.0
  %87 = vmatprep.subr.mxu0 0.0
  %88 = vmatpush1.msra.mxu0 0.0
  %89 = vmatprep.subr.mxu0 0.0
  %90 = vmatpush1.msra.mxu0 0.0
  %91 = vmatprep.subr.mxu0 0.0
  %92 = vmatpush1.msra.mxu0 0.0
  %93 = vmatprep.subr.mxu0 0.0
  %94 = vmatpush1.msra.mxu0 0.0
  %95 = vmatprep.subr.mxu0 0.0
  %96 = vmatpush1.msra.mxu0 0.0
  %97 = vmatprep.subr.mxu0 0.0
  %98 = vmatpush1.msra.mxu0 0.0
  %99 = vmatprep.subr.mxu0 0.0
  %100 = vmatpush1.msra.mxu0 0.0
  %101 = vmatprep.subr.mxu0 0.0
  %102 = vmatpush1.msra.mxu0 0.0
  %103 = vmatprep.subr.mxu0 0.0
  %104 = vmatpush1.msra.mxu0 0.0
  %105 = vmatprep.subr.mxu0 0.0
  %106 = vmatpush1.msra.mxu0 0.0
  %107 = vmatprep.subr.mxu0 0.0
  %108 = vmatpush1.msra.mxu0 0.0
  %109 = vmatprep.subr.mxu0 0.0
  %110 = vmatpush1.msra.mxu0 0.0
  %111 = vmatprep.subr.mxu0 0.0
  %112 = vmatpush1.msra.mxu0 0.0
  %113 = vmatprep.subr.mxu0 0.0
  %114 = vmatpush1.msra.mxu0 0.0
  %115 = vmatprep.mubr.f32.mxu0 0.0
  %116 = vmatmul.mubr.f32.gmra.mrb[0].mxu0 %v49
  %v117 = vpop.f32.mrb[0].mxu0
  %v118 = vadd.f32 %v45, %v117
  %v119 = vpop.f32.mrb[0].mxu0
  %120 = vdwg.mxu0
  %v121 = vld [vmem:[%s5] sm:$0xff]
  %v122 = vld [vmem:[%s5 + $0x8] sm:$0xff]
  %v123 = vld [vmem:[%s5 + $0x10] sm:$0xff]
  %v124 = vld [vmem:[%s5 + $0x18] sm:$0xff]
  %v125 = vld [vmem:[%s5 + $0x20] sm:$0xff]
  %v126 = vld [vmem:[%s5 + $0x28] sm:$0xff]
  %v127 = vld [vmem:[%s5 + $0x30] sm:$0xff]
  %v128 = vld [vmem:[%s5 + $0x38] sm:$0xff]
  %vm129 = vcmask 523264
  %v131 = vsel %vm129, %v27, 0
  %v134 = vsel %vm129, %v28, 0
  %v137 = vsel %vm129, %v29, 0
  %v140 = vsel %vm129, %v30, 0
  %v143 = vsel %vm129, %v31, 0
  %v146 = vsel %vm129, %v32, 0
  %v149 = vsel %vm129, %v33, 0
  %v152 = vsel %vm129, %v34, 0
  %154 = vmatprep.subr.mxu0 0.0
  %155 = vmatpush1.msra.mxu0 %v121
  %156 = vmatprep.subr.mxu0 0.0
  %157 = vmatpush1.msra.mxu0 %v122
  %158 = vmatprep.subr.mxu0 0.0
  %159 = vmatpush1.msra.mxu0 %v123
  %160 = vmatprep.subr.mxu0 0.0
  %161 = vmatpush1.msra.mxu0 %v124
  %162 = vmatprep.subr.mxu0 0.0
  %163 = vmatpush1.msra.mxu0 %v125
  %164 = vmatprep.subr.mxu0 0.0
  %165 = vmatpush1.msra.mxu0 %v126
  %166 = vmatprep.subr.mxu0 0.0
  %167 = vmatpush1.msra.mxu0 %v127
  %168 = vmatprep.subr.mxu0 0.0
  %169 = vmatpush1.msra.mxu0 %v128
  %170 = vmatprep.subr.mxu0 0.0
  %171 = vmatpush1.msra.mxu0 0.0
  %172 = vmatprep.subr.mxu0 0.0
  %173 = vmatpush1.msra.mxu0 0.0
  %174 = vmatprep.subr.mxu0 0.0
  %175 = vmatpush1.msra.mxu0 0.0
  %176 = vmatprep.subr.mxu0 0.0
  %177 = vmatpush1.msra.mxu0 0.0
  %178 = vmatprep.subr.mxu0 0.0
  %179 = vmatpush1.msra.mxu0 0.0
  %180 = vmatprep.subr.mxu0 0.0
  %181 = vmatpush1.msra.mxu0 0.0
  %182 = vmatprep.subr.mxu0 0.0
  %183 = vmatpush1.msra.mxu0 0.0
  %184 = vmatprep.subr.mxu0 0.0
  %185 = vmatpush1.msra.mxu0 0.0
  %186 = vmatprep.subr.mxu0 0.0
  %187 = vmatpush1.msra.mxu0 0.0
  %188 = vmatprep.subr.mxu0 0.0
  %189 = vmatpush1.msra.mxu0 0.0
  %190 = vmatprep.subr.mxu0 0.0
  %191 = vmatpush1.msra.mxu0 0.0
  %192 = vmatprep.subr.mxu0 0.0
  %193 = vmatpush1.msra.mxu0 0.0
  %194 = vmatprep.subr.mxu0 0.0
  %195 = vmatpush1.msra.mxu0 0.0
  %196 = vmatprep.subr.mxu0 0.0
  %197 = vmatpush1.msra.mxu0 0.0
  %198 = vmatprep.subr.mxu0 0.0
  %199 = vmatpush1.msra.mxu0 0.0
  %200 = vmatprep.subr.mxu0 0.0
  %201 = vmatpush1.msra.mxu0 0.0
  %202 = vmatprep.subr.mxu0 0.0
  %203 = vmatpush1.msra.mxu0 0.0
  %204 = vmatprep.subr.mxu0 0.0
  %205 = vmatpush1.msra.mxu0 0.0
  %206 = vmatprep.subr.mxu0 0.0
  %207 = vmatpush1.msra.mxu0 0.0
  %208 = vmatprep.subr.mxu0 0.0
  %209 = vmatpush1.msra.mxu0 0.0
  %210 = vmatprep.subr.mxu0 0.0
  %211 = vmatpush1.msra.mxu0 0.0
  %212 = vmatprep.subr.mxu0 0.0
  %213 = vmatpush1.msra.mxu0 0.0
  %214 = vmatprep.subr.mxu0 0.0
  %215 = vmatpush1.msra.mxu0 0.0
  %216 = vmatprep.subr.mxu0 0.0
  %217 = vmatpush1.msra.mxu0 0.0
  %218 = vmatprep.mubr.f32.mxu0 0.0
  %219 = vmatmul.mubr.f32.gmra.mrb[0].mxu0 %v131
  %v220 = vpop.f32.mrb[0].mxu0
  %v221 = vadd.f32 0.0, %v220
  %v222 = vpop.f32.mrb[0].mxu0
  %223 = vmatprep.mubr.f32.mxu0 0.0
  %224 = vmatmul.mubr.f32.gmra.mrb[0].mxu0 %v134
  %v225 = vpop.f32.mrb[0].mxu0
  %v226 = vadd.f32 0.0, %v225
  %v227 = vpop.f32.mrb[0].mxu0
  %228 = vmatprep.mubr.f32.mxu0 0.0
  %229 = vmatmul.mubr.f32.gmra.mrb[0].mxu0 %v137
  %v230 = vpop.f32.mrb[0].mxu0
  %v231 = vadd.f32 0.0, %v230
  %v232 = vpop.f32.mrb[0].mxu0
  %233 = vmatprep.mubr.f32.mxu0 0.0
  %234 = vmatmul.mubr.f32.gmra.mrb[0].mxu0 %v140
  %v235 = vpop.f32.mrb[0].mxu0
  %v236 = vadd.f32 0.0, %v235
  %v237 = vpop.f32.mrb[0].mxu0
  %238 = vmatprep.mubr.f32.mxu0 0.0
  %239 = vmatmul.mubr.f32.gmra.mrb[0].mxu0 %v143
  %v240 = vpop.f32.mrb[0].mxu0
  %v241 = vadd.f32 0.0, %v240
  %v242 = vpop.f32.mrb[0].mxu0
  %243 = vmatprep.mubr.f32.mxu0 0.0
  %244 = vmatmul.mubr.f32.gmra.mrb[0].mxu0 %v146
  %v245 = vpop.f32.mrb[0].mxu0
  %v246 = vadd.f32 0.0, %v245
  %v247 = vpop.f32.mrb[0].mxu0
  %248 = vmatprep.mubr.f32.mxu0 0.0
  %249 = vmatmul.mubr.f32.gmra.mrb[0].mxu0 %v149
  %v250 = vpop.f32.mrb[0].mxu0
  %v251 = vadd.f32 0.0, %v250
  %v252 = vpop.f32.mrb[0].mxu0
  %253 = vmatprep.mubr.f32.mxu0 0.0
  %254 = vmatmul.mubr.f32.gmra.mrb[0].mxu0 %v152
  %v255 = vpop.f32.mrb[0].mxu0
  %v256 = vadd.f32 0.0, %v255
  %v257 = vpop.f32.mrb[0].mxu0
  %258 = vdwg.mxu0
  %v260 = vcombine.high %v118, %v118
  %v262 = vunpack.c.l.s4 1966171168
  %v263 = vunpack.c.0.s8 %v262
  %v264 = vlaneseq
  %v265 = vshrl.u32 %v264, 7
  %v266 = vsub.s32 %v263, %v265
  %v267 = vrot.slane %v118, %v266
  %v269 = vunpack.c.l.s4 1966171168
  %v270 = vunpack.c.0.s8 %v269
  %v271 = vlaneseq
  %v272 = vshrl.u32 %v271, 7
  %v273 = vsub.s32 %v270, %v272
  %v274 = vrot.slane %v260, %v273
  %v275 = vcombine.high %v267, %v267
  %v276 = vcombine.high %v274, %v274
  %v278 = vunpack.c.l.s4 1966171168
  %v279 = vunpack.c.0.s8 %v278
  %v280 = vlaneseq
  %v281 = vshrl.u32 %v280, 7
  %v282 = vsub.s32 %v279, %v281
  %v283 = vrot.slane %v267, %v282
  %v285 = vunpack.c.l.s4 1966171168
  %v286 = vunpack.c.0.s8 %v285
  %v287 = vlaneseq
  %v288 = vshrl.u32 %v287, 7
  %v289 = vsub.s32 %v286, %v288
  %v290 = vrot.slane %v274, %v289
  %v292 = vunpack.c.l.s4 1966171168
  %v293 = vunpack.c.0.s8 %v292
  %v294 = vlaneseq
  %v295 = vshrl.u32 %v294, 7
  %v296 = vsub.s32 %v293, %v295
  %v297 = vrot.slane %v275, %v296
  %v299 = vunpack.c.l.s4 1966171168
  %v300 = vunpack.c.0.s8 %v299
  %v301 = vlaneseq
  %v302 = vshrl.u32 %v301, 7
  %v303 = vsub.s32 %v300, %v302
  %v304 = vrot.slane %v276, %v303
  %v305 = vcombine.high %v283, %v283
  %v306 = vcombine.high %v290, %v290
  %v307 = vcombine.high %v297, %v297
  %v308 = vcombine.high %v304, %v304
  %v309 = vlaneseq
  %v310 = vshrl.u32 %v309, 7
  %v311 = vsub.s32 0, %v310
  %v312 = vrot.slane %v283, %v311
  %v313 = vlaneseq
  %v314 = vshrl.u32 %v313, 7
  %v315 = vsub.s32 0, %v314
  %v316 = vrot.slane %v297, %v315
  %v317 = vlaneseq
  %v318 = vshrl.u32 %v317, 7
  %v319 = vsub.s32 0, %v318
  %v320 = vrot.slane %v305, %v319
  %v321 = vlaneseq
  %v322 = vshrl.u32 %v321, 7
  %v323 = vsub.s32 0, %v322
  %v324 = vrot.slane %v307, %v323
  %v325 = vlaneseq
  %v326 = vshrl.u32 %v325, 7
  %v327 = vsub.s32 0, %v326
  %v328 = vrot.slane %v290, %v327
  %v329 = vlaneseq
  %v330 = vshrl.u32 %v329, 7
  %v331 = vsub.s32 0, %v330
  %v332 = vrot.slane %v304, %v331
  %v333 = vlaneseq
  %v334 = vshrl.u32 %v333, 7
  %v335 = vsub.s32 0, %v334
  %v336 = vrot.slane %v306, %v335
  %v337 = vlaneseq
  %v338 = vshrl.u32 %v337, 7
  %v339 = vsub.s32 0, %v338
  %v340 = vrot.slane %v308, %v339
  %v349 = vadd.f32 %v312, %v221
  %v350 = vadd.f32 %v316, %v226
  %v351 = vadd.f32 %v320, %v231
  %v352 = vadd.f32 %v324, %v236
  %v353 = vadd.f32 %v328, %v241
  %v354 = vadd.f32 %v332, %v246
  %v355 = vadd.f32 %v336, %v251
  %v356 = vadd.f32 %v340, %v256
  %v357 = vtanh.pop %v349
  %v358 = vtanh.pop %v350
  %v359 = vtanh.pop %v351
  %v360 = vtanh.pop %v352
  %v361 = vtanh.pop %v353
  %v362 = vtanh.pop %v354
  %v363 = vtanh.pop %v355
  %v364 = vtanh.pop %v356
  %v365 = vld [vmem:[%s6] sm:$0x1]
  %v367 = vlaneseq
  %v368 = vshrl.u32 %v367, 7
  %v369 = vsub.s32 0, %v368
  %v370 = vrot.slane %v365, %v369
  %v372 = vmul.f32 %v357, %v370
  %v373 = vmul.f32 %v358, %v370
  %v374 = vmul.f32 %v359, %v370
  %v375 = vmul.f32 %v360, %v370
  %v376 = vmul.f32 %v361, %v370
  %v377 = vmul.f32 %v362, %v370
  %v378 = vmul.f32 %v363, %v370
  %v379 = vmul.f32 %v364, %v370
  %v380 = vsel %vm47, %v372, 0.0
  %381 = vadd.xlane.f32.xlu0 %v380
  %v382 = vpop.xlane.xlu0 %381
  %v383 = vsel %vm47, %v373, 0.0
  %384 = vadd.xlane.f32.xlu0 %v383
  %v385 = vpop.xlane.xlu0 %384
  %v386 = vsel %vm47, %v374, 0.0
  %387 = vadd.xlane.f32.xlu0 %v386
  %v388 = vpop.xlane.xlu0 %387
  %v389 = vsel %vm47, %v375, 0.0
  %390 = vadd.xlane.f32.xlu0 %v389
  %v391 = vpop.xlane.xlu0 %390
  %v392 = vsel %vm47, %v376, 0.0
  %393 = vadd.xlane.f32.xlu0 %v392
  %v394 = vpop.xlane.xlu0 %393
  %v395 = vsel %vm47, %v377, 0.0
  %396 = vadd.xlane.f32.xlu0 %v395
  %v397 = vpop.xlane.xlu0 %396
  %v398 = vsel %vm47, %v378, 0.0
  %399 = vadd.xlane.f32.xlu0 %v398
  %v400 = vpop.xlane.xlu0 %399
  %v401 = vsel %vm47, %v379, 0.0
  %402 = vadd.xlane.f32.xlu0 %v401
  %v403 = vpop.xlane.xlu0 %402
  %vm404 = vcmp.eq.s32.totalorder %v35, 0
  %v413 = vlaneseq
  %v414 = vand.u32 %v413, 127
  %v415 = vlaneseq
  %v416 = vshrl.u32 %v415, 7
  %v417 = vsub.s32 %v414, %v416
  %v418 = vrot.slane %v382, %v417
  %v419 = vlaneseq
  %v420 = vshrl.u32 %v419, 7
  %v421 = vsub.s32 %v414, %v420
  %v422 = vrot.slane %v385, %v421
  %v423 = vlaneseq
  %v424 = vshrl.u32 %v423, 7
  %v425 = vsub.s32 %v414, %v424
  %v426 = vrot.slane %v388, %v425
  %v427 = vlaneseq
  %v428 = vshrl.u32 %v427, 7
  %v429 = vsub.s32 %v414, %v428
  %v430 = vrot.slane %v391, %v429
  %v431 = vlaneseq
  %v432 = vshrl.u32 %v431, 7
  %v433 = vsub.s32 %v414, %v432
  %v434 = vrot.slane %v394, %v433
  %v435 = vlaneseq
  %v436 = vshrl.u32 %v435, 7
  %v437 = vsub.s32 %v414, %v436
  %v438 = vrot.slane %v397, %v437
  %v439 = vlaneseq
  %v440 = vshrl.u32 %v439, 7
  %v441 = vsub.s32 %v414, %v440
  %v442 = vrot.slane %v400, %v441
  %v443 = vlaneseq
  %v444 = vshrl.u32 %v443, 7
  %v445 = vsub.s32 %v414, %v444
  %v446 = vrot.slane %v403, %v445
  %vm447 = vcmask 1041409
  %v448 = vsel %vm447, %v422, %v418
  %vm449 = vcmask 1042434
  %v450 = vsel %vm449, %v426, %v448
  %vm451 = vcmask 1043459
  %v452 = vsel %vm451, %v430, %v450
  %vm453 = vcmask 1044484
  %v454 = vsel %vm453, %v434, %v452
  %vm455 = vcmask 1045509
  %v456 = vsel %vm455, %v438, %v454
  %vm457 = vcmask 1046534
  %v458 = vsel %vm457, %v442, %v456
  %vm459 = vcmask 1047559
  %v460 = vsel %vm459, %v446, %v458
  %v462 = vsel %vm404, -1e+10, %v460
  %vm463 = vcmask 64512
  %v464 = vsel %vm463, %v462, -inf
  %465 = vmax.xlane.f32.xlu0 %v464
  %v466 = vpop.xlane.xlu0 %465
  %v467 = vsub.f32 %v462, %v466
  %v468 = vmul.f32 %v467, 1.442695
  %v469 = vpow.pop %v468
  %v470 = vsel %vm463, %v469, 0.0
  %471 = vadd.xlane.f32.xlu0 %v470
  %v472 = vpop.xlane.xlu0 %471
  %v473 = vrcp.pop %v472
  %v474 = vmul.f32 %v469, %v473
  %v475 = vlaneseq
  %v476 = vshrl.u32 %v475, 7
  %v477 = vsub.s32 0, %v476
  %v478 = vrot.slane %v474, %v477
  %480 = vbcast.lane.b32.xlu0 %v478, 256
  %v481 = vpop.permute.xlu0 %480
  %v482 = vlaneseq
  %v483 = vshrl.u32 %v482, 7
  %v484 = vsub.s32 1, %v483
  %v485 = vrot.slane %v474, %v484
  %487 = vbcast.lane.b32.xlu0 %v485, 256
  %v488 = vpop.permute.xlu0 %487
  %v489 = vlaneseq
  %v490 = vshrl.u32 %v489, 7
  %v491 = vsub.s32 2, %v490
  %v492 = vrot.slane %v474, %v491
  %494 = vbcast.lane.b32.xlu0 %v492, 256
  %v495 = vpop.permute.xlu0 %494
  %v496 = vlaneseq
  %v497 = vshrl.u32 %v496, 7
  %v498 = vsub.s32 3, %v497
  %v499 = vrot.slane %v474, %v498
  %501 = vbcast.lane.b32.xlu0 %v499, 256
  %v502 = vpop.permute.xlu0 %501
  %v503 = vlaneseq
  %v504 = vshrl.u32 %v503, 7
  %v505 = vsub.s32 4, %v504
  %v506 = vrot.slane %v474, %v505
  %508 = vbcast.lane.b32.xlu0 %v506, 256
  %v509 = vpop.permute.xlu0 %508
  %v510 = vlaneseq
  %v511 = vshrl.u32 %v510, 7
  %v512 = vsub.s32 5, %v511
  %v513 = vrot.slane %v474, %v512
  %515 = vbcast.lane.b32.xlu0 %v513, 256
  %v516 = vpop.permute.xlu0 %515
  %v517 = vlaneseq
  %v518 = vshrl.u32 %v517, 7
  %v519 = vsub.s32 6, %v518
  %v520 = vrot.slane %v474, %v519
  %522 = vbcast.lane.b32.xlu0 %v520, 256
  %v523 = vpop.permute.xlu0 %522
  %v524 = vlaneseq
  %v525 = vshrl.u32 %v524, 7
  %v526 = vsub.s32 7, %v525
  %v527 = vrot.slane %v474, %v526
  %529 = vbcast.lane.b32.xlu0 %v527, 256
  %v530 = vpop.permute.xlu0 %529
  %v531 = vmul.f32 %v481, %v27
  %v532 = vmul.f32 %v488, %v28
  %v533 = vmul.f32 %v495, %v29
  %v534 = vmul.f32 %v502, %v30
  %v535 = vmul.f32 %v509, %v31
  %v536 = vmul.f32 %v516, %v32
  %v537 = vmul.f32 %v523, %v33
  %v538 = vmul.f32 %v530, %v34
  %v539 = vsel %vm129, %v531, 0.0
  %v540 = vrot.slane %v539, 4
  %v541 = vadd.f32 %v539, %v540
  %v542 = vrot.slane %v541, 2
  %v543 = vadd.f32 %v541, %v542
  %v544 = vrot.slane %v543, 1
  %v545 = vadd.f32 %v543, %v544
  %v546 = vsel %vm129, %v532, 0.0
  %v547 = vrot.slane %v546, 4
  %v548 = vadd.f32 %v546, %v547
  %v549 = vrot.slane %v548, 2
  %v550 = vadd.f32 %v548, %v549
  %v551 = vrot.slane %v550, 1
  %v552 = vadd.f32 %v550, %v551
  %v553 = vsel %vm129, %v533, 0.0
  %v554 = vrot.slane %v553, 4
  %v555 = vadd.f32 %v553, %v554
  %v556 = vrot.slane %v555, 2
  %v557 = vadd.f32 %v555, %v556
  %v558 = vrot.slane %v557, 1
  %v559 = vadd.f32 %v557, %v558
  %v560 = vsel %vm129, %v534, 0.0
  %v561 = vrot.slane %v560, 4
  %v562 = vadd.f32 %v560, %v561
  %v563 = vrot.slane %v562, 2
  %v564 = vadd.f32 %v562, %v563
  %v565 = vrot.slane %v564, 1
  %v566 = vadd.f32 %v564, %v565
  %v567 = vsel %vm129, %v535, 0.0
  %v568 = vrot.slane %v567, 4
  %v569 = vadd.f32 %v567, %v568
  %v570 = vrot.slane %v569, 2
  %v571 = vadd.f32 %v569, %v570
  %v572 = vrot.slane %v571, 1
  %v573 = vadd.f32 %v571, %v572
  %v574 = vsel %vm129, %v536, 0.0
  %v575 = vrot.slane %v574, 4
  %v576 = vadd.f32 %v574, %v575
  %v577 = vrot.slane %v576, 2
  %v578 = vadd.f32 %v576, %v577
  %v579 = vrot.slane %v578, 1
  %v580 = vadd.f32 %v578, %v579
  %v581 = vsel %vm129, %v537, 0.0
  %v582 = vrot.slane %v581, 4
  %v583 = vadd.f32 %v581, %v582
  %v584 = vrot.slane %v583, 2
  %v585 = vadd.f32 %v583, %v584
  %v586 = vrot.slane %v585, 1
  %v587 = vadd.f32 %v585, %v586
  %v588 = vsel %vm129, %v538, 0.0
  %v589 = vrot.slane %v588, 4
  %v590 = vadd.f32 %v588, %v589
  %v591 = vrot.slane %v590, 2
  %v592 = vadd.f32 %v590, %v591
  %v593 = vrot.slane %v592, 1
  %v594 = vadd.f32 %v592, %v593
  %v603 = vsel %vm447, %v552, %v545
  %v604 = vsel %vm449, %v559, %v603
  %v605 = vsel %vm451, %v566, %v604
  %v606 = vsel %vm453, %v573, %v605
  %v607 = vsel %vm455, %v580, %v606
  %v608 = vsel %vm457, %v587, %v607
  %v609 = vsel %vm459, %v594, %v608
  %611 = vst.msk [vmem:[%s7] sm:$0xff] %vm129, %v609
  // Predicated region
  $region30: #{simple_attention.1} parent=0 // pred_check
    _
  $region31: #{simple_attention.1} parent=0 // pred_check_branch
    %613 = sbr.rel (0) target = $region33
  $region32: #{simple_attention.1} parent=0 // pred_region
    _
  $region33: #{simple_attention.1} parent=0 // pred_fallthru
    _
  // Predicated region
  $region34: #{simple_attention.1} parent=0 // pred_check
    _
  $region35: #{simple_attention.1} parent=0 // pred_check_branch
    %615 = sbr.rel (0) target = $region37
  $region36: #{simple_attention.1} parent=0 // pred_region
    _
  $region37: #{simple_attention.1} parent=0 // pred_fallthru
    _

</llo_original>
